<compile_context>
chip_gen: v7x
topology: tpu7x:2x2x1
jax: 0.10.0
libtpu: 0.0.40
codegen_flags: <defaults>
</compile_context>

<pallas_src>
import functools

import jax
import jax.numpy as jnp
import numpy as np
from jax import lax
from jax.experimental import pallas as pl
from jax.experimental.pallas import tpu as pltpu

LEAKY_SLOPE = 0.1


# --------------------------------------------------------------------------- static planning
def _build_plan(channels, init_k, kernel_sizes, dilations):
    """Static polyphase plan shared by pack_params (weight packing) and the kernel."""
    s = init_k // 2                       # upsample stride
    pad_t = (init_k - s) // 2             # ConvTranspose1d padding
    C_in = channels
    C_out = channels // 2
    K = init_k

    # ConvTranspose1d taps, polyphase domain: output phase r uses tap k iff (r+pad_t-k) % s == 0,
    # reading input at time-shift sh = (r+pad_t-k)//s.
    convT_taps = []
    for r in range(s):
        for k in range(K):
            if (r + pad_t - k) % s == 0:
                convT_taps.append((r, k, (r + pad_t - k) // s))
    shifts_T = tuple(sorted({sh for (_, _, sh) in convT_taps}))

    # MRF conv layers (flattened across branches), taps in the polyphase domain:
    # output phase rp, tap k reads source phase (rp-p+k*d) % s at time-shift (rp-p+k*d) // s.
    layers = []
    for bi, ks in enumerate(kernel_sizes):
        ds = dilations[bi]
        for j, d in enumerate(ds):
            p = (ks * d - d) // 2
            taps = []
            for rp in range(s):
                for k in range(ks):
                    o = rp - p + k * d
                    taps.append((rp, k, o % s, o // s))
            layers.append(dict(ks=ks, d=d, p=p, taps=taps,
                               first=(j == 0), last=(j == len(ds) - 1)))
    shifts_M = tuple(sorted({sh for lay in layers for (_, _, _, sh) in lay["taps"]}))

    return dict(s=s, pad_t=pad_t, C_in=C_in, C_out=C_out, K=K,
                convT_taps=convT_taps, shifts_T=shifts_T,
                layers=layers, shifts_M=shifts_M,
                n_branches=len(kernel_sizes))


# --------------------------------------------------------------------------- fused kernel
def _make_usblock_kernel(plan, T):
    s, C_in, C_out = plan["s"], plan["C_in"], plan["C_out"]
    shifts_T, shifts_M = plan["shifts_T"], plan["shifts_M"]
    layers = plan["layers"]
    inv_branches = 1.0 / plan["n_branches"]
    L = s * T

    def leaky(v):
        return jnp.maximum(v, LEAKY_SLOPE * v)     # exact for slope in (0,1)

    def stacked_windows(a, shifts):
        """Vertically stack zero-padded shifted copies of a: rows block i = a[:, t+shifts[i]]."""
        rows = a.shape[0]
        pl_pad = max(0, -min(shifts))
        pr_pad = max(0, max(shifts))
        pieces = []
        if pl_pad:
            pieces.append(jnp.zeros((rows, pl_pad), jnp.float32))
        pieces.append(a)
        if pr_pad:
            pieces.append(jnp.zeros((rows, pr_pad), jnp.float32))
        ap = jnp.concatenate(pieces, axis=1) if len(pieces) > 1 else a
        return jnp.concatenate([ap[:, pl_pad + sh: pl_pad + sh + T] for sh in shifts], axis=0)

    def kernel(x_ref, wT_ref, bT_ref, wm_ref, bm_ref, o_ref):
        f32 = jnp.float32

        # ---- leaky + ConvTranspose1d (polyphase, ONE dot; contraction = n_shifts*C_in) ----
        xa = leaky(x_ref[0].astype(f32))                               # (C_in, T)
        rhs_t = stacked_windows(xa, shifts_T)                          # (n_shT*C_in, T)
        h = jnp.dot(wT_ref[...], rhs_t,
                    preferred_element_type=f32) + bT_ref[...]          # (s*C_out, T)

        # ---- MRF: one dot per dilated conv layer, phases merged on the sublane axis ----
        out_acc = None
        hb = h
        for li, layer in enumerate(layers):
            if layer["first"]:
                hb = h                                                 # each ResBlock starts from h
            rhs = stacked_windows(leaky(hb), shifts_M)                 # (n_shM*s*C_out, T)
            hb = hb + bm_ref[li] + jnp.dot(wm_ref[li], rhs,
                                           preferred_element_type=f32)
            if layer["last"]:
                out_acc = hb if out_acc is None else out_acc + hb

        # ---- interleave the s phases onto the lane axis -> lane-dense (C_out, L) output ----
        # out[c, s*q + r] = out_acc[r*C_out + c, q] / n_branches ; the 1/k_r mean is folded into
        # the 0/1 spread matrices, and the interleave rides the (otherwise idle) MXU.
        q_i = lax.broadcasted_iota(jnp.int32, (T, L), 0)
        l_i = lax.broadcasted_iota(jnp.int32, (T, L), 1)
        out = None
        for r in range(s):
            spread = jnp.where(l_i == s * q_i + r, inv_branches, 0.0).astype(f32)
            part = jnp.dot(out_acc[r * C_out:(r + 1) * C_out, :], spread,
                           preferred_element_type=f32)
            out = part if out is None else out + part
        o_ref[0] = out.astype(o_ref.dtype)

    return kernel


# --------------------------------------------------------------------------- forward wrapper
def us_block_forward(x, packed, *, channels, init_k, kernel_sizes, dilations):
    B, C_in, T = x.shape
    plan = _build_plan(channels, init_k, kernel_sizes, dilations)
    s, C_out, pad_t = plan["s"], plan["C_out"], plan["pad_t"]
    L = (T - 1) * s - 2 * pad_t + init_k
    assert L == s * T, "fused polyphase path assumes init_k == 2*stride (standard HiFi-GAN upsample)"

    kernel = _make_usblock_kernel(plan, T)
    WT, bT, Wm, bm = packed["WT"], packed["bT"], packed["Wm"], packed["bm"]

    out = pl.pallas_call(
        kernel,
        out_shape=jax.ShapeDtypeStruct((B, C_out, L), x.dtype),
        grid=(B,),
        in_specs=[
            pl.BlockSpec((1, C_in, T), lambda g: (g, 0, 0)),
            pl.BlockSpec(WT.shape, lambda g: (0, 0)),
            pl.BlockSpec(bT.shape, lambda g: (0, 0)),
            pl.BlockSpec(Wm.shape, lambda g: (0, 0, 0)),
            pl.BlockSpec(bm.shape, lambda g: (0, 0, 0)),
        ],
        out_specs=pl.BlockSpec((1, C_out, L), lambda g: (g, 0, 0)),
        compiler_params=pltpu.CompilerParams(
            dimension_semantics=("parallel",),
            vmem_limit_bytes=32 * 1024 * 1024,
        ),
    )(x, WT, bT, Wm, bm)
    return out                              # already (B, C_out, L): no wrapper transpose/reshape


# --------------------------------------------------------------------------- params (init + pack)
def init_us_block_params(key, channels, init_k, kernel_sizes, dilations):
    out_c = channels // 2
    n_keys = 2 + 2 * sum(len(ds) for ds in dilations)
    keys = iter(jax.random.split(key, n_keys))
    sc = 0.1
    params = {
        "convT_w": sc * jax.random.normal(next(keys), (channels, out_c, init_k), jnp.float32),
        "convT_b": sc * jax.random.normal(next(keys), (out_c,), jnp.float32),
        "mrf_w": [], "mrf_b": [],
    }
    for i, ks in enumerate(kernel_sizes):
        ws, bs = [], []
        for _ in dilations[i]:
            ws.append(sc * jax.random.normal(next(keys), (out_c, out_c, ks), jnp.float32))
            bs.append(sc * jax.random.normal(next(keys), (out_c,), jnp.float32))
        params["mrf_w"].append(ws)
        params["mrf_b"].append(bs)
    return params


def pack_params(params, *, channels, init_k, kernel_sizes, dilations):
    """One-time weight repacking into block matrices (kept out of the forward path).

    WT : (s*C_out, n_shT*C_in)            one matrix for the whole polyphase ConvTranspose1d
    bT : (s*C_out, 1)                     convT bias repeated per output phase
    Wm : (n_layers, s*C_out, n_shM*s*C_out)  one block matrix per MRF dilated conv
    bm : (n_layers, s*C_out, 1)
    """
    plan = _build_plan(channels, init_k, kernel_sizes, dilations)
    s, C_in, C_out = plan["s"], plan["C_in"], plan["C_out"]
    shifts_T, shifts_M = plan["shifts_T"], plan["shifts_M"]
    W_sc = s * C_out

    w_t = np.asarray(params["convT_w"], np.float32)            # (C_in, C_out, K) PyTorch layout
    WT = np.zeros((W_sc, len(shifts_T) * C_in), np.float32)
    for (r, k, sh) in plan["convT_taps"]:
        shi = shifts_T.index(sh)
        WT[r * C_out:(r + 1) * C_out, shi * C_in:(shi + 1) * C_in] += w_t[:, :, k].T
    bT = np.zeros((W_sc, 1), np.float32)
    b_t = np.asarray(params["convT_b"], np.float32)
    for r in range(s):
        bT[r * C_out:(r + 1) * C_out, 0] = b_t

    flat_w = [w for ws in params["mrf_w"] for w in ws]
    flat_b = [b for bs in params["mrf_b"] for b in bs]
    n_layers = len(plan["layers"])
    Wm = np.zeros((n_layers, W_sc, len(shifts_M) * W_sc), np.float32)
    bm = np.zeros((n_layers, W_sc, 1), np.float32)
    for li, layer in enumerate(plan["layers"]):
        w = np.asarray(flat_w[li], np.float32)                  # (C_out, C_out, ks) PyTorch layout
        b = np.asarray(flat_b[li], np.float32)
        for (rp, k, ph, sh) in layer["taps"]:
            shi = shifts_M.index(sh)
            col = shi * W_sc + ph * C_out
            Wm[li, rp * C_out:(rp + 1) * C_out, col:col + C_out] += w[:, :, k]
        for rp in range(s):
            bm[li, rp * C_out:(rp + 1) * C_out, 0] = b

    return {"WT": jnp.asarray(WT), "bT": jnp.asarray(bT),
            "Wm": jnp.asarray(Wm), "bm": jnp.asarray(bm)}


# --------------------------------------------------------------------------- pure-JAX reference
def _leaky(x):
    return jnp.where(x > 0, x, LEAKY_SLOPE * x)


def reference_forward(x, params, *, channels, init_k, kernel_sizes, dilations):
    """Pure-JAX (lax.conv_general_dilated) reference matching PyTorch semantics."""
    stride = init_k // 2
    pad_t = (init_k - stride) // 2
    x = _leaky(x)
    w_eq = jnp.transpose(params["convT_w"][:, :, ::-1], (1, 0, 2))
    y = lax.conv_general_dilated(
        x, w_eq, window_strides=(1,),
        padding=[(init_k - 1 - pad_t, init_k - 1 - pad_t)],
        lhs_dilation=(stride,), dimension_numbers=("NCH", "OIH", "NCH"))
    y = y + params["convT_b"][None, :, None]

    out = 0.0
    for i, ks in enumerate(kernel_sizes):
        h = y
        for j, d in enumerate(dilations[i]):
            p = (ks * d - d) // 2
            res = h
            h = lax.conv_general_dilated(
                _leaky(h), params["mrf_w"][i][j], window_strides=(1,),
                padding=[(p, p)], rhs_dilation=(d,),
                dimension_numbers=("NCH", "OIH", "NCH"))
            h = h + params["mrf_b"][i][j][None, :, None] + res
        out = out + h
    return out / len(kernel_sizes)


# --------------------------------------------------------------------------- main
if __name__ == "__main__":
    # Module config: USBlock(channels=8, init_conv_kernel_size=4, kernel_size=[3,5],
    #                        dilation=[[1,2],[1,2]])
    channels = 8
    init_k = 4
    kernel_sizes = (3, 5)
    dilations = ((1, 2), (1, 2))

    key = jax.random.PRNGKey(0)
    k_params, k_x = jax.random.split(key)
    params = init_us_block_params(k_params, channels, init_k, kernel_sizes, dilations)
    packed = pack_params(params, channels=channels, init_k=init_k,
                         kernel_sizes=kernel_sizes, dilations=dilations)

    B, T = 2, 16
    x = jax.random.normal(k_x, (B, channels, T), jnp.float32)   # NCL, like PyTorch Conv1d input

    fwd = jax.jit(functools.partial(
        us_block_forward, channels=channels, init_k=init_k,
        kernel_sizes=kernel_sizes, dilations=dilations))
    out = fwd(x, packed)
    jax.block_until_ready(out)

    ref = reference_forward(x, params, channels=channels, init_k=init_k,
                            kernel_sizes=kernel_sizes, dilations=dilations)
    stride = init_k // 2
    L = (T - 1) * stride - 2 * ((init_k - stride) // 2) + init_k
    assert out.shape == (B, channels // 2, L)
    assert jnp.allclose(out, ref, rtol=1e-5, atol=1e-5), "Pallas output mismatch vs reference"

    print("KERNEL_OK")
</pallas_src>

<mosaic_0001>
module attributes {stable_mosaic.version = 11 : i64} {
  func.func @kernel(%arg0: i32, %arg1: memref<1x8x16xf32, #tpu.memory_space<vmem>>, %arg2: memref<8x24xf32, #tpu.memory_space<vmem>>, %arg3: memref<8x1xf32, #tpu.memory_space<vmem>>, %arg4: memref<4x8x40xf32, #tpu.memory_space<vmem>>, %arg5: memref<4x8x1xf32, #tpu.memory_space<vmem>>, %arg6: memref<1x4x32xf32, #tpu.memory_space<vmem>>) attributes {dimension_semantics = [#tpu.dimension_semantics<parallel>], iteration_bounds = array<i64: 2>, scalar_prefetch = 0 : i64, scratch_operands = 0 : i64, tpu.core_type = #tpu.core_type<tc>, window_params = [{transform_indices = @transform_0, window_bounds = array<i64: 1, 8, 16>}, {pipeline_mode = #tpu.pipeline_mode<synchronous>, transform_indices = @transform_1, window_bounds = array<i64: 8, 24>}, {pipeline_mode = #tpu.pipeline_mode<synchronous>, transform_indices = @transform_2, window_bounds = array<i64: 8, 1>}, {pipeline_mode = #tpu.pipeline_mode<synchronous>, transform_indices = @transform_3, window_bounds = array<i64: 4, 8, 40>}, {pipeline_mode = #tpu.pipeline_mode<synchronous>, transform_indices = @transform_4, window_bounds = array<i64: 4, 8, 1>}, {transform_indices = @transform_5, window_bounds = array<i64: 1, 4, 32>}]} {
    %c0 = arith.constant 0 : index
    %c0_0 = arith.constant 0 : index
    %c0_1 = arith.constant 0 : index
    %0 = vector.load %arg1[%c0, %c0_0, %c0_1] : memref<1x8x16xf32, #tpu.memory_space<vmem>>, vector<1x8x16xf32>
    %1 = vector.shape_cast %0 : vector<1x8x16xf32> to vector<8x16xf32>
    %cst = arith.constant 1.000000e-01 : f32
    %2 = vector.broadcast %cst : f32 to vector<8x16xf32>
    %3 = arith.mulf %2, %1 : vector<8x16xf32>
    %4 = arith.maximumf %1, %3 : vector<8x16xf32>
    %cst_2 = arith.constant 0.000000e+00 : f32
    %5 = vector.broadcast %cst_2 : f32 to vector<8x1xf32>
    %cst_3 = arith.constant 0.000000e+00 : f32
    %6 = vector.broadcast %cst_3 : f32 to vector<8x1xf32>
    %7 = tpu.concatenate %5, %4, %6 in 1 : vector<8x1xf32>, vector<8x16xf32>, vector<8x1xf32> -> vector<8x18xf32>
    %8 = vector.extract_strided_slice %7 {offsets = [0, 0], sizes = [8, 16], strides = [1, 1]} : vector<8x18xf32> to vector<8x16xf32>
    %9 = vector.extract_strided_slice %7 {offsets = [0, 1], sizes = [8, 16], strides = [1, 1]} : vector<8x18xf32> to vector<8x16xf32>
    %10 = vector.extract_strided_slice %7 {offsets = [0, 2], sizes = [8, 16], strides = [1, 1]} : vector<8x18xf32> to vector<8x16xf32>
    %11 = tpu.concatenate %8, %9, %10 in 0 : vector<8x16xf32>, vector<8x16xf32>, vector<8x16xf32> -> vector<24x16xf32>
    %c0_4 = arith.constant 0 : index
    %c0_5 = arith.constant 0 : index
    %12 = vector.load %arg2[%c0_4, %c0_5] : memref<8x24xf32, #tpu.memory_space<vmem>>, vector<8x24xf32>
    %cst_6 = arith.constant dense<0.000000e+00> : vector<8x16xf32>
    %13 = tpu.matmul %12, %11, %cst_6 {dimension_numbers = #tpu.dot_dimension_numbers<[1], [0], [0], [1], [0, 0, 1, 1], [], []>} : vector<8x24xf32>, vector<24x16xf32>, vector<8x16xf32> -> vector<8x16xf32>
    %c0_7 = arith.constant 0 : index
    %c0_8 = arith.constant 0 : index
    %14 = vector.load %arg3[%c0_7, %c0_8] : memref<8x1xf32, #tpu.memory_space<vmem>>, vector<8x1xf32>
    %15 = vector.broadcast %14 : vector<8x1xf32> to vector<8x16xf32>
    %16 = arith.addf %13, %15 : vector<8x16xf32>
    %cst_9 = arith.constant 1.000000e-01 : f32
    %17 = vector.broadcast %cst_9 : f32 to vector<8x16xf32>
    %18 = arith.mulf %17, %16 : vector<8x16xf32>
    %19 = arith.maximumf %16, %18 : vector<8x16xf32>
    %cst_10 = arith.constant 0.000000e+00 : f32
    %20 = vector.broadcast %cst_10 : f32 to vector<8x2xf32>
    %cst_11 = arith.constant 0.000000e+00 : f32
    %21 = vector.broadcast %cst_11 : f32 to vector<8x2xf32>
    %22 = tpu.concatenate %20, %19, %21 in 1 : vector<8x2xf32>, vector<8x16xf32>, vector<8x2xf32> -> vector<8x20xf32>
    %23 = vector.extract_strided_slice %22 {offsets = [0, 0], sizes = [8, 16], strides = [1, 1]} : vector<8x20xf32> to vector<8x16xf32>
    %24 = vector.extract_strided_slice %22 {offsets = [0, 1], sizes = [8, 16], strides = [1, 1]} : vector<8x20xf32> to vector<8x16xf32>
    %25 = vector.extract_strided_slice %22 {offsets = [0, 2], sizes = [8, 16], strides = [1, 1]} : vector<8x20xf32> to vector<8x16xf32>
    %26 = vector.extract_strided_slice %22 {offsets = [0, 3], sizes = [8, 16], strides = [1, 1]} : vector<8x20xf32> to vector<8x16xf32>
    %27 = vector.extract_strided_slice %22 {offsets = [0, 4], sizes = [8, 16], strides = [1, 1]} : vector<8x20xf32> to vector<8x16xf32>
    %28 = tpu.concatenate %23, %24, %25, %26, %27 in 0 : vector<8x16xf32>, vector<8x16xf32>, vector<8x16xf32>, vector<8x16xf32>, vector<8x16xf32> -> vector<40x16xf32>
    %c0_12 = arith.constant 0 : index
    %c0_13 = arith.constant 0 : index
    %c0_14 = arith.constant 0 : index
    %29 = vector.load %arg5[%c0_12, %c0_13, %c0_14] : memref<4x8x1xf32, #tpu.memory_space<vmem>>, vector<1x8x1xf32>
    %30 = vector.shape_cast %29 : vector<1x8x1xf32> to vector<8x1xf32>
    %31 = vector.broadcast %30 : vector<8x1xf32> to vector<8x16xf32>
    %32 = arith.addf %16, %31 : vector<8x16xf32>
    %c0_15 = arith.constant 0 : index
    %c0_16 = arith.constant 0 : index
    %c0_17 = arith.constant 0 : index
    %33 = vector.load %arg4[%c0_15, %c0_16, %c0_17] : memref<4x8x40xf32, #tpu.memory_space<vmem>>, vector<1x8x40xf32>
    %34 = vector.shape_cast %33 : vector<1x8x40xf32> to vector<8x40xf32>
    %cst_18 = arith.constant dense<0.000000e+00> : vector<8x16xf32>
    %35 = tpu.matmul %34, %28, %cst_18 {dimension_numbers = #tpu.dot_dimension_numbers<[1], [0], [0], [1], [0, 0, 1, 1], [], []>} : vector<8x40xf32>, vector<40x16xf32>, vector<8x16xf32> -> vector<8x16xf32>
    %36 = arith.addf %32, %35 : vector<8x16xf32>
    %cst_19 = arith.constant 1.000000e-01 : f32
    %37 = vector.broadcast %cst_19 : f32 to vector<8x16xf32>
    %38 = arith.mulf %37, %36 : vector<8x16xf32>
    %39 = arith.maximumf %36, %38 : vector<8x16xf32>
    %cst_20 = arith.constant 0.000000e+00 : f32
    %40 = vector.broadcast %cst_20 : f32 to vector<8x2xf32>
    %cst_21 = arith.constant 0.000000e+00 : f32
    %41 = vector.broadcast %cst_21 : f32 to vector<8x2xf32>
    %42 = tpu.concatenate %40, %39, %41 in 1 : vector<8x2xf32>, vector<8x16xf32>, vector<8x2xf32> -> vector<8x20xf32>
    %43 = vector.extract_strided_slice %42 {offsets = [0, 0], sizes = [8, 16], strides = [1, 1]} : vector<8x20xf32> to vector<8x16xf32>
    %44 = vector.extract_strided_slice %42 {offsets = [0, 1], sizes = [8, 16], strides = [1, 1]} : vector<8x20xf32> to vector<8x16xf32>
    %45 = vector.extract_strided_slice %42 {offsets = [0, 2], sizes = [8, 16], strides = [1, 1]} : vector<8x20xf32> to vector<8x16xf32>
    %46 = vector.extract_strided_slice %42 {offsets = [0, 3], sizes = [8, 16], strides = [1, 1]} : vector<8x20xf32> to vector<8x16xf32>
    %47 = vector.extract_strided_slice %42 {offsets = [0, 4], sizes = [8, 16], strides = [1, 1]} : vector<8x20xf32> to vector<8x16xf32>
    %48 = tpu.concatenate %43, %44, %45, %46, %47 in 0 : vector<8x16xf32>, vector<8x16xf32>, vector<8x16xf32>, vector<8x16xf32>, vector<8x16xf32> -> vector<40x16xf32>
    %c1 = arith.constant 1 : index
    %c0_22 = arith.constant 0 : index
    %c0_23 = arith.constant 0 : index
    %49 = vector.load %arg5[%c1, %c0_22, %c0_23] : memref<4x8x1xf32, #tpu.memory_space<vmem>>, vector<1x8x1xf32>
    %50 = vector.shape_cast %49 : vector<1x8x1xf32> to vector<8x1xf32>
    %51 = vector.broadcast %50 : vector<8x1xf32> to vector<8x16xf32>
    %52 = arith.addf %36, %51 : vector<8x16xf32>
    %c1_24 = arith.constant 1 : index
    %c0_25 = arith.constant 0 : index
    %c0_26 = arith.constant 0 : index
    %53 = vector.load %arg4[%c1_24, %c0_25, %c0_26] : memref<4x8x40xf32, #tpu.memory_space<vmem>>, vector<1x8x40xf32>
    %54 = vector.shape_cast %53 : vector<1x8x40xf32> to vector<8x40xf32>
    %cst_27 = arith.constant dense<0.000000e+00> : vector<8x16xf32>
    %55 = tpu.matmul %54, %48, %cst_27 {dimension_numbers = #tpu.dot_dimension_numbers<[1], [0], [0], [1], [0, 0, 1, 1], [], []>} : vector<8x40xf32>, vector<40x16xf32>, vector<8x16xf32> -> vector<8x16xf32>
    %56 = arith.addf %52, %55 : vector<8x16xf32>
    %cst_28 = arith.constant 1.000000e-01 : f32
    %57 = vector.broadcast %cst_28 : f32 to vector<8x16xf32>
    %58 = arith.mulf %57, %16 : vector<8x16xf32>
    %59 = arith.maximumf %16, %58 : vector<8x16xf32>
    %cst_29 = arith.constant 0.000000e+00 : f32
    %60 = vector.broadcast %cst_29 : f32 to vector<8x2xf32>
    %cst_30 = arith.constant 0.000000e+00 : f32
    %61 = vector.broadcast %cst_30 : f32 to vector<8x2xf32>
    %62 = tpu.concatenate %60, %59, %61 in 1 : vector<8x2xf32>, vector<8x16xf32>, vector<8x2xf32> -> vector<8x20xf32>
    %63 = vector.extract_strided_slice %62 {offsets = [0, 0], sizes = [8, 16], strides = [1, 1]} : vector<8x20xf32> to vector<8x16xf32>
    %64 = vector.extract_strided_slice %62 {offsets = [0, 1], sizes = [8, 16], strides = [1, 1]} : vector<8x20xf32> to vector<8x16xf32>
    %65 = vector.extract_strided_slice %62 {offsets = [0, 2], sizes = [8, 16], strides = [1, 1]} : vector<8x20xf32> to vector<8x16xf32>
    %66 = vector.extract_strided_slice %62 {offsets = [0, 3], sizes = [8, 16], strides = [1, 1]} : vector<8x20xf32> to vector<8x16xf32>
    %67 = vector.extract_strided_slice %62 {offsets = [0, 4], sizes = [8, 16], strides = [1, 1]} : vector<8x20xf32> to vector<8x16xf32>
    %68 = tpu.concatenate %63, %64, %65, %66, %67 in 0 : vector<8x16xf32>, vector<8x16xf32>, vector<8x16xf32>, vector<8x16xf32>, vector<8x16xf32> -> vector<40x16xf32>
    %c2 = arith.constant 2 : index
    %c0_31 = arith.constant 0 : index
    %c0_32 = arith.constant 0 : index
    %69 = vector.load %arg5[%c2, %c0_31, %c0_32] : memref<4x8x1xf32, #tpu.memory_space<vmem>>, vector<1x8x1xf32>
    %70 = vector.shape_cast %69 : vector<1x8x1xf32> to vector<8x1xf32>
    %71 = vector.broadcast %70 : vector<8x1xf32> to vector<8x16xf32>
    %72 = arith.addf %16, %71 : vector<8x16xf32>
    %c2_33 = arith.constant 2 : index
    %c0_34 = arith.constant 0 : index
    %c0_35 = arith.constant 0 : index
    %73 = vector.load %arg4[%c2_33, %c0_34, %c0_35] : memref<4x8x40xf32, #tpu.memory_space<vmem>>, vector<1x8x40xf32>
    %74 = vector.shape_cast %73 : vector<1x8x40xf32> to vector<8x40xf32>
    %cst_36 = arith.constant dense<0.000000e+00> : vector<8x16xf32>
    %75 = tpu.matmul %74, %68, %cst_36 {dimension_numbers = #tpu.dot_dimension_numbers<[1], [0], [0], [1], [0, 0, 1, 1], [], []>} : vector<8x40xf32>, vector<40x16xf32>, vector<8x16xf32> -> vector<8x16xf32>
    %76 = arith.addf %72, %75 : vector<8x16xf32>
    %cst_37 = arith.constant 1.000000e-01 : f32
    %77 = vector.broadcast %cst_37 : f32 to vector<8x16xf32>
    %78 = arith.mulf %77, %76 : vector<8x16xf32>
    %79 = arith.maximumf %76, %78 : vector<8x16xf32>
    %cst_38 = arith.constant 0.000000e+00 : f32
    %80 = vector.broadcast %cst_38 : f32 to vector<8x2xf32>
    %cst_39 = arith.constant 0.000000e+00 : f32
    %81 = vector.broadcast %cst_39 : f32 to vector<8x2xf32>
    %82 = tpu.concatenate %80, %79, %81 in 1 : vector<8x2xf32>, vector<8x16xf32>, vector<8x2xf32> -> vector<8x20xf32>
    %83 = vector.extract_strided_slice %82 {offsets = [0, 0], sizes = [8, 16], strides = [1, 1]} : vector<8x20xf32> to vector<8x16xf32>
    %84 = vector.extract_strided_slice %82 {offsets = [0, 1], sizes = [8, 16], strides = [1, 1]} : vector<8x20xf32> to vector<8x16xf32>
    %85 = vector.extract_strided_slice %82 {offsets = [0, 2], sizes = [8, 16], strides = [1, 1]} : vector<8x20xf32> to vector<8x16xf32>
    %86 = vector.extract_strided_slice %82 {offsets = [0, 3], sizes = [8, 16], strides = [1, 1]} : vector<8x20xf32> to vector<8x16xf32>
    %87 = vector.extract_strided_slice %82 {offsets = [0, 4], sizes = [8, 16], strides = [1, 1]} : vector<8x20xf32> to vector<8x16xf32>
    %88 = tpu.concatenate %83, %84, %85, %86, %87 in 0 : vector<8x16xf32>, vector<8x16xf32>, vector<8x16xf32>, vector<8x16xf32>, vector<8x16xf32> -> vector<40x16xf32>
    %c3 = arith.constant 3 : index
    %c0_40 = arith.constant 0 : index
    %c0_41 = arith.constant 0 : index
    %89 = vector.load %arg5[%c3, %c0_40, %c0_41] : memref<4x8x1xf32, #tpu.memory_space<vmem>>, vector<1x8x1xf32>
    %90 = vector.shape_cast %89 : vector<1x8x1xf32> to vector<8x1xf32>
    %91 = vector.broadcast %90 : vector<8x1xf32> to vector<8x16xf32>
    %92 = arith.addf %76, %91 : vector<8x16xf32>
    %c3_42 = arith.constant 3 : index
    %c0_43 = arith.constant 0 : index
    %c0_44 = arith.constant 0 : index
    %93 = vector.load %arg4[%c3_42, %c0_43, %c0_44] : memref<4x8x40xf32, #tpu.memory_space<vmem>>, vector<1x8x40xf32>
    %94 = vector.shape_cast %93 : vector<1x8x40xf32> to vector<8x40xf32>
    %cst_45 = arith.constant dense<0.000000e+00> : vector<8x16xf32>
    %95 = tpu.matmul %94, %88, %cst_45 {dimension_numbers = #tpu.dot_dimension_numbers<[1], [0], [0], [1], [0, 0, 1, 1], [], []>} : vector<8x40xf32>, vector<40x16xf32>, vector<8x16xf32> -> vector<8x16xf32>
    %96 = arith.addf %92, %95 : vector<8x16xf32>
    %97 = arith.addf %56, %96 : vector<8x16xf32>
    %98 = tpu.iota {dimensions = array<i32: 0>} : vector<16x32xi32>
    %99 = tpu.iota {dimensions = array<i32: 1>} : vector<16x32xi32>
    %c2_i32 = arith.constant 2 : i32
    %100 = vector.broadcast %c2_i32 : i32 to vector<16x32xi32>
    %101 = arith.muli %100, %98 : vector<16x32xi32>
    %c0_i32 = arith.constant 0 : i32
    %102 = vector.broadcast %c0_i32 : i32 to vector<16x32xi32>
    %103 = arith.addi %101, %102 : vector<16x32xi32>
    %104 = arith.cmpi eq, %99, %103 : vector<16x32xi32>
    %cst_46 = arith.constant 5.000000e-01 : f32
    %cst_47 = arith.constant 0.000000e+00 : f32
    %105 = vector.broadcast %cst_46 : f32 to vector<16x32xf32>
    %106 = vector.broadcast %cst_47 : f32 to vector<16x32xf32>
    %107 = arith.select %104, %105, %106 : vector<16x32xi1>, vector<16x32xf32>
    %108 = vector.extract_strided_slice %97 {offsets = [0, 0], sizes = [4, 16], strides = [1, 1]} : vector<8x16xf32> to vector<4x16xf32>
    %cst_48 = arith.constant dense<0.000000e+00> : vector<4x32xf32>
    %109 = tpu.matmul %108, %107, %cst_48 {dimension_numbers = #tpu.dot_dimension_numbers<[1], [0], [0], [1], [0, 0, 1, 1], [], []>} : vector<4x16xf32>, vector<16x32xf32>, vector<4x32xf32> -> vector<4x32xf32>
    %c2_i32_49 = arith.constant 2 : i32
    %110 = vector.broadcast %c2_i32_49 : i32 to vector<16x32xi32>
    %111 = arith.muli %110, %98 : vector<16x32xi32>
    %c1_i32 = arith.constant 1 : i32
    %112 = vector.broadcast %c1_i32 : i32 to vector<16x32xi32>
    %113 = arith.addi %111, %112 : vector<16x32xi32>
    %114 = arith.cmpi eq, %99, %113 : vector<16x32xi32>
    %cst_50 = arith.constant 5.000000e-01 : f32
    %cst_51 = arith.constant 0.000000e+00 : f32
    %115 = vector.broadcast %cst_50 : f32 to vector<16x32xf32>
    %116 = vector.broadcast %cst_51 : f32 to vector<16x32xf32>
    %117 = arith.select %114, %115, %116 : vector<16x32xi1>, vector<16x32xf32>
    %118 = vector.extract_strided_slice %97 {offsets = [4, 0], sizes = [4, 16], strides = [1, 1]} : vector<8x16xf32> to vector<4x16xf32>
    %cst_52 = arith.constant dense<0.000000e+00> : vector<4x32xf32>
    %119 = tpu.matmul %118, %117, %cst_52 {dimension_numbers = #tpu.dot_dimension_numbers<[1], [0], [0], [1], [0, 0, 1, 1], [], []>} : vector<4x16xf32>, vector<16x32xf32>, vector<4x32xf32> -> vector<4x32xf32>
    %120 = arith.addf %109, %119 : vector<4x32xf32>
    %c0_53 = arith.constant 0 : index
    %c0_54 = arith.constant 0 : index
    %c0_55 = arith.constant 0 : index
    %121 = vector.load %arg6[%c0_53, %c0_54, %c0_55] : memref<1x4x32xf32, #tpu.memory_space<vmem>>, vector<1x4x32xf32>
    %122 = vector.shape_cast %121 : vector<1x4x32xf32> to vector<4x32xf32>
    %123 = vector.shape_cast %120 : vector<4x32xf32> to vector<1x4x32xf32>
    tpu.vector_store %arg6[%c0_53, %c0_54, %c0_55], %123 {strides = array<i32>} : memref<1x4x32xf32, #tpu.memory_space<vmem>>, vector<1x4x32xf32>,
    return
  }
  func.func @transform_0(%arg0: i32) -> (i32, i32, i32) {
    %c0_i32 = arith.constant 0 : i32
    %c0_i32_0 = arith.constant 0 : i32
    %c0_i32_1 = arith.constant 0 : i32
    return %arg0, %c0_i32, %c0_i32_0 : i32, i32, i32
  }
  func.func @transform_1(%arg0: i32) -> (i32, i32) {
    %c0_i32 = arith.constant 0 : i32
    %c0_i32_0 = arith.constant 0 : i32
    %c0_i32_1 = arith.constant 0 : i32
    return %c0_i32, %c0_i32_0 : i32, i32
  }
  func.func @transform_2(%arg0: i32) -> (i32, i32) {
    %c0_i32 = arith.constant 0 : i32
    %c0_i32_0 = arith.constant 0 : i32
    %c0_i32_1 = arith.constant 0 : i32
    return %c0_i32, %c0_i32_0 : i32, i32
  }
  func.func @transform_3(%arg0: i32) -> (i32, i32, i32) {
    %c0_i32 = arith.constant 0 : i32
    %c0_i32_0 = arith.constant 0 : i32
    %c0_i32_1 = arith.constant 0 : i32
    %c0_i32_2 = arith.constant 0 : i32
    return %c0_i32, %c0_i32_0, %c0_i32_1 : i32, i32, i32
  }
  func.func @transform_4(%arg0: i32) -> (i32, i32, i32) {
    %c0_i32 = arith.constant 0 : i32
    %c0_i32_0 = arith.constant 0 : i32
    %c0_i32_1 = arith.constant 0 : i32
    %c0_i32_2 = arith.constant 0 : i32
    return %c0_i32, %c0_i32_0, %c0_i32_1 : i32, i32, i32
  }
  func.func @transform_5(%arg0: i32) -> (i32, i32, i32) {
    %c0_i32 = arith.constant 0 : i32
    %c0_i32_0 = arith.constant 0 : i32
    %c0_i32_1 = arith.constant 0 : i32
    return %arg0, %c0_i32, %c0_i32_0 : i32, i32, i32
  }
}

</mosaic_0001>

<llo_original>
// kernel: us_block_forward.1
$region0: #{us_block_forward.1}
  #allocation0 [shape = 'u32[]', space=smem, size = 0x4, offset = 0x4, fixed_abs, tag = 'smem constant byte address 0x4 - core index']
  #allocation1 [shape = 'u32[144,128]{1,0:T(1,128)}', space=vmem, size = 0x12000, scoped, tag = 'internal scratch']
  %s0 = inlined_call_operand.vmem [shape: f32[2,8,16], index: 0, kind: input, shape index: {}]
  %s1 = inlined_call_operand.hbm [shape: f32[8,24], index: 1, kind: input, shape index: {}]
  %s2 = inlined_call_operand.vmem [shape: f32[8,1], index: 2, kind: input, shape index: {}]
  %s3 = inlined_call_operand.vmem [shape: f32[4,8,40], index: 3, kind: input, shape index: {}]
  %s4 = inlined_call_operand.vmem [shape: f32[4,8,1], index: 4, kind: input, shape index: {}]
  %s5 = inlined_call_operand.hbm [shape: f32[2,4,32], index: 5, kind: output, shape index: {}]
  %s6 = sld [smem:[#allocation0]]
  $region57: #{us_block_forward.1} parent=0
    _
  %s8 = ssub.s32 1, %s6
  %s9 = scalar_select 0, %s8, %s6
  $region1: #{us_block_forward.1} parent=0
    #allocation2 [shape = 'u8[4096]{0}', space=vmem, size = 0x1000, scoped, tag = 'input window, operand 1, single buffered']
    #allocation3 [shape = 's32[2]{0}', space=sflag, size = 0x8, scoped, tag = 'scoped memory for us_block_forward.1']
    #allocation4 [shape = 's32[2]{0}', space=sflag, size = 0x8, scoped, tag = 'scoped memory for us_block_forward.1']
    #allocation5 [shape = 'u8[4096]{0}', space=vmem, size = 0x1000, scoped, tag = 'output window, operand 0']
    %10 = vsyncpa [#allocation3], 0
    %11 = vsyncpa [#allocation4], 0
    %s12 = scalar_lea.sflag [#allocation4], 1
    %13 = vsyncpa %s12, 0
    loop: start=0, step=1, limit=4
    $region2: #{us_block_forward.1} parent=1 // loop_pre_header
      _
    $region3: #{us_block_forward.1} parent=1 // loop_header
      %s15 = sphi 0, %s19
      %p16 = scmp.ge.s32.totalorder %s15, 4
      %s25 = sphi 0, %s27
      %s28 = sphi 0, %s25
      %s29 = sphi 0, %s28
      %s45 = sphi 0, %s29
      %s49 = sphi 0, %s49
      %s51 = sphi 0, %s49
      %s52 = sphi 0, %s51
      %s66 = sphi 0, %s52
      %s70 = sphi 0, %s70
      %s72 = sphi 0, %s70
      %s73 = sphi 0, %s72
      %s87 = sphi 0, %s73
      %s91 = sphi 0, %s91
      %s93 = sphi 0, %s91
      %s94 = sphi 0, %s93
      %s108 = sphi 0, %s94
      %s112 = sphi 0, %s112
      %s114 = sphi 0, %s112
      %s115 = sphi 0, %s114
      %s129 = sphi 0, %s115
      %s135 = sphi 0, %s137
      %s138 = sphi 0, %s135
      %s139 = sphi 0, %s138
      %s155 = sphi 0, %s139
    $region4: #{us_block_forward.1} parent=1 // loop_header_branch
      %18 = sbr.rel (%p16) target = $region8
    $region5: #{us_block_forward.1} parent=1 // loop_body
      %s20 = ssub.s32 %s15, 1
      %s21 = ssub.s32 %s15, 2
      %s22 = sadd.s32 %s15, 1
      %s23 = ssub.s32 %s15, %s22
      %p24 = scmp.eq.s32.totalorder %s23, 0
      %s26 = sadd.s32 %s25, 1
      %s27 = scalar_select %p24, %s25, %s26
      %p30 = pneg %p24
      %p31 = scmp.eq.s32.totalorder %s15, 1
      %p32 = por %p30, %p31
      %p33 = scmp.ne.s32.totalorder %s25, %s28
      %p34 = scmp.eq.s32.totalorder %s15, 0
      %p35 = por %p33, %p34
      %p36 = scmp.ne.s32.totalorder %s25, %s28
      %p37 = scmp.eq.s32.totalorder %s20, 1
      %p38 = por %p36, %p37
      %p39 = scmp.ne.s32.totalorder %s28, %s29
      %p40 = scmp.eq.s32.totalorder %s20, 0
      %p41 = por %p39, %p40
      %p42 = scmp.ne.s32.totalorder %s28, %s29
      %p43 = scmp.eq.s32.totalorder %s21, 1
      %p44 = por %p42, %p43
      %p46 = scmp.ne.s32.totalorder %s29, %s45
      %p47 = scmp.eq.s32.totalorder %s21, 0
      %p48 = por %p46, %p47
      %s50 = sadd.s32 %s49, 1
      %p53 = scmp.eq.s32.totalorder %s15, 1
      %p54 = scmp.ne.s32.totalorder %s49, %s51
      %p55 = scmp.eq.s32.totalorder %s15, 0
      %p56 = por %p54, %p55
      %p57 = scmp.ne.s32.totalorder %s49, %s51
      %p58 = scmp.eq.s32.totalorder %s20, 1
      %p59 = por %p57, %p58
      %p60 = scmp.ne.s32.totalorder %s51, %s52
      %p61 = scmp.eq.s32.totalorder %s20, 0
      %p62 = por %p60, %p61
      %p63 = scmp.ne.s32.totalorder %s51, %s52
      %p64 = scmp.eq.s32.totalorder %s21, 1
      %p65 = por %p63, %p64
      %p67 = scmp.ne.s32.totalorder %s52, %s66
      %p68 = scmp.eq.s32.totalorder %s21, 0
      %p69 = por %p67, %p68
      %s71 = sadd.s32 %s70, 1
      %p74 = scmp.eq.s32.totalorder %s15, 1
      %p75 = scmp.ne.s32.totalorder %s70, %s72
      %p76 = scmp.eq.s32.totalorder %s15, 0
      %p77 = por %p75, %p76
      %p78 = scmp.ne.s32.totalorder %s70, %s72
      %p79 = scmp.eq.s32.totalorder %s20, 1
      %p80 = por %p78, %p79
      %p81 = scmp.ne.s32.totalorder %s72, %s73
      %p82 = scmp.eq.s32.totalorder %s20, 0
      %p83 = por %p81, %p82
      %p84 = scmp.ne.s32.totalorder %s72, %s73
      %p85 = scmp.eq.s32.totalorder %s21, 1
      %p86 = por %p84, %p85
      %p88 = scmp.ne.s32.totalorder %s73, %s87
      %p89 = scmp.eq.s32.totalorder %s21, 0
      %p90 = por %p88, %p89
      %s92 = sadd.s32 %s91, 1
      %p95 = scmp.eq.s32.totalorder %s15, 1
      %p96 = scmp.ne.s32.totalorder %s91, %s93
      %p97 = scmp.eq.s32.totalorder %s15, 0
      %p98 = por %p96, %p97
      %p99 = scmp.ne.s32.totalorder %s91, %s93
      %p100 = scmp.eq.s32.totalorder %s20, 1
      %p101 = por %p99, %p100
      %p102 = scmp.ne.s32.totalorder %s93, %s94
      %p103 = scmp.eq.s32.totalorder %s20, 0
      %p104 = por %p102, %p103
      %p105 = scmp.ne.s32.totalorder %s93, %s94
      %p106 = scmp.eq.s32.totalorder %s21, 1
      %p107 = por %p105, %p106
      %p109 = scmp.ne.s32.totalorder %s94, %s108
      %p110 = scmp.eq.s32.totalorder %s21, 0
      %p111 = por %p109, %p110
      %s113 = sadd.s32 %s112, 1
      %p116 = scmp.eq.s32.totalorder %s15, 1
      %p117 = scmp.ne.s32.totalorder %s112, %s114
      %p118 = scmp.eq.s32.totalorder %s15, 0
      %p119 = por %p117, %p118
      %p120 = scmp.ne.s32.totalorder %s112, %s114
      %p121 = scmp.eq.s32.totalorder %s20, 1
      %p122 = por %p120, %p121
      %p123 = scmp.ne.s32.totalorder %s114, %s115
      %p124 = scmp.eq.s32.totalorder %s20, 0
      %p125 = por %p123, %p124
      %p126 = scmp.ne.s32.totalorder %s114, %s115
      %p127 = scmp.eq.s32.totalorder %s21, 1
      %p128 = por %p126, %p127
      %p130 = scmp.ne.s32.totalorder %s115, %s129
      %p131 = scmp.eq.s32.totalorder %s21, 0
      %p132 = por %p130, %p131
      %s133 = ssub.s32 %s15, %s22
      %p134 = scmp.eq.s32.totalorder %s133, 0
      %s136 = sadd.s32 %s135, 1
      %s137 = scalar_select %p134, %s135, %s136
      %p140 = pneg %p134
      %p141 = scmp.eq.s32.totalorder %s15, 1
      %p142 = por %p140, %p141
      %p143 = scmp.ne.s32.totalorder %s135, %s138
      %p144 = scmp.eq.s32.totalorder %s15, 0
      %p145 = por %p143, %p144
      %p146 = scmp.ne.s32.totalorder %s135, %s138
      %p147 = scmp.eq.s32.totalorder %s20, 1
      %p148 = por %p146, %p147
      %p149 = scmp.ne.s32.totalorder %s138, %s139
      %p150 = scmp.eq.s32.totalorder %s20, 0
      %p151 = por %p149, %p150
      %p152 = scmp.ne.s32.totalorder %s138, %s139
      %p153 = scmp.eq.s32.totalorder %s21, 1
      %p154 = por %p152, %p153
      %p156 = scmp.ne.s32.totalorder %s139, %s155
      %p157 = scmp.eq.s32.totalorder %s21, 0
      %p158 = por %p156, %p157
      %p159 = scmp.le.s32.totalorder 1, %s15
      %p160 = scmp.lt.s32.totalorder %s15, 3
      %p161 = pnand %p159, %p160
      %p162 = pneg %p161
      // Predicated region
      $region9: #{us_block_forward.1} parent=5 // pred_check
        _
      $region10: #{us_block_forward.1} parent=5 // pred_check_branch
        %164 = sbr.rel (%p161) target = $region12
      $region11: #{us_block_forward.1} parent=5 // pred_region
        %s165 = ssub.s32 %s15, 1
        // Predicated region
        $region13: #{us_block_forward.1} parent=11 // pred_check
          %p166 = pneg %p62
        $region14: #{us_block_forward.1} parent=11 // pred_check_branch
          %168 = sbr.rel (%p166) target = $region16
        $region15: #{us_block_forward.1} parent=11 // pred_region
          %s170 = ssub.s32 128, 128
          %171 = vsyncadd [#allocation3], %s170
          %s173 = sshll.u32 [#allocation2], 4
          %s174 = int_to_ptr.vmem [resolvable:$true] %s173
          %176 = dma.hbm_to_vmem [thread:$0]  %s1, 128, %s174, [#allocation3]
        $region16: #{us_block_forward.1} parent=11 // pred_fallthru
          _
        // Predicated region
        $region17: #{us_block_forward.1} parent=11 // pred_check
          %p177 = pneg %p83
        $region18: #{us_block_forward.1} parent=11 // pred_check_branch
          %179 = sbr.rel (%p177) target = $region20
        $region19: #{us_block_forward.1} parent=11 // pred_region
          _
        $region20: #{us_block_forward.1} parent=11 // pred_fallthru
          _
        // Predicated region
        $region21: #{us_block_forward.1} parent=11 // pred_check
          %p180 = pneg %p104
        $region22: #{us_block_forward.1} parent=11 // pred_check_branch
          %182 = sbr.rel (%p180) target = $region24
        $region23: #{us_block_forward.1} parent=11 // pred_region
          _
        $region24: #{us_block_forward.1} parent=11 // pred_fallthru
          _
        // Predicated region
        $region25: #{us_block_forward.1} parent=11 // pred_check
          %p183 = pneg %p125
        $region26: #{us_block_forward.1} parent=11 // pred_check_branch
          %185 = sbr.rel (%p183) target = $region28
        $region27: #{us_block_forward.1} parent=11 // pred_region
          _
        $region28: #{us_block_forward.1} parent=11 // pred_fallthru
          _
      $region12: #{us_block_forward.1} parent=5 // pred_fallthru
        _
      %p186 = scmp.lt.s32.totalorder %s15, 2
      // Predicated region
      $region29: #{us_block_forward.1} parent=5 // pred_check
        %p187 = pneg %p186
      $region30: #{us_block_forward.1} parent=5 // pred_check_branch
        %189 = sbr.rel (%p187) target = $region32
      $region31: #{us_block_forward.1} parent=5 // pred_region
        // Predicated region
        $region33: #{us_block_forward.1} parent=31 // pred_check
          %p190 = pneg %p35
        $region34: #{us_block_forward.1} parent=31 // pred_check_branch
          %192 = sbr.rel (%p190) target = $region36
        $region35: #{us_block_forward.1} parent=31 // pred_region
          %p193 = scmp.lt.s32.totalorder %s15, 1
          %s194 = scalar_select %p193, %s15, 1
          %s195 = smul.addr %s194, 8
          %s196 = scalar_lea.vmem %s0, %s195
        $region36: #{us_block_forward.1} parent=31 // pred_fallthru
          _
      $region32: #{us_block_forward.1} parent=5 // pred_fallthru
        _
      %p197 = scmp.le.s32.totalorder 1, %s15
      %p198 = scmp.lt.s32.totalorder %s15, 3
      %p199 = pnand %p197, %p198
      %p200 = pneg %p199
      // Predicated region
      $region37: #{us_block_forward.1} parent=5 // pred_check
        _
      $region38: #{us_block_forward.1} parent=5 // pred_check_branch
        %202 = sbr.rel (%p199) target = $region40
      $region39: #{us_block_forward.1} parent=5 // pred_region
        %s203 = ssub.s32 %s15, 1
        // Predicated region
        $region41: #{us_block_forward.1} parent=39 // pred_check
          %p204 = pneg %p62
        $region42: #{us_block_forward.1} parent=39 // pred_check_branch
          %206 = sbr.rel (%p204) target = $region44
        $region43: #{us_block_forward.1} parent=39 // pred_region
          %207 = dma.done [#allocation3], 128
        $region44: #{us_block_forward.1} parent=39 // pred_fallthru
          _
        %p208 = scmp.lt.s32.totalorder %s20, 1
        %s209 = scalar_select %p208, %s20, 1
        %s210 = smul.addr %s209, 8
        %s211 = scalar_lea.vmem %s0, %s210
        %p212 = pneg %p41
        %p213 = pneg %p38
        %p214 = pneg %p62
        %p215 = pneg %p59
        %p216 = pneg %p83
        %p217 = pneg %p80
        %p218 = pneg %p104
        %p219 = pneg %p101
        %p220 = pneg %p125
        %p221 = pneg %p122
        %p222 = pneg %p151
        %p223 = pneg %p148
        %s224 = sand.u32 %s138, 1
        %s225 = scalar_lea.sflag [#allocation4], %s224
        %s226 = sand.u32 %s138, 1
        %s227 = smul.addr %s226, 4
        %s228 = scalar_lea.vmem [#allocation5], %s227
        %p229 = scmp.lt.s32.totalorder %s20, 1
        %s230 = scalar_select %p229, %s20, 1
        %s231 = smul.addr %s230, 8
        %s232 = scalar_lea.vmem %s0, %s231
        %v233 = vld [vmem:[%s232] sm:$0xff]
        %v234 = vmul.f32 %v233, 0.1
        %v235 = vmax.f32 %v233, %v234
        %237 = vrot.lane.b32.xlu0 %v235, 1
        %v238 = vpop.permute.xlu0 %237
        %vm240 = vcmask 7168
        %v241 = vsel %vm240, 0.0, %v238
        %vm242 = vcmask 138240
        %v243 = vsel %vm242, %v241, 0.0
        %245 = vrot.lane.b32.xlu0 %v243, 127
        %v246 = vpop.permute.xlu0 %245
        %248 = vrot.lane.b32.xlu0 %v243, 126
        %v249 = vpop.permute.xlu0 %248
        %v251 = vld [vmem:[#allocation2] sm:$0xff]
        %v252 = vld [vmem:[%s2] sm:$0xff]
        %254 = vset.pattern.permute.xlu0 0
        %255 = vperm.xlu0 %254, %v252
        %v256 = vpop.permute.xlu0 %255
        %vm258 = vcmask 195584
        %v260 = vsel %vm258, %v251, 0
        %262 = vmatprep.subr.mxu0 0.0
        %263 = vmatpush1.msra.mxu0 %v243
        %264 = vmatprep.subr.mxu0 0.0
        %265 = vmatpush1.msra.mxu0 %v246
        %266 = vmatprep.subr.mxu0 0.0
        %267 = vmatpush1.msra.mxu0 %v249
        %268 = vmatprep.subr.mxu0 0.0
        %269 = vmatpush1.msra.mxu0 0.0
        %270 = vmatprep.subr.mxu0 0.0
        %271 = vmatpush1.msra.mxu0 0.0
        %272 = vmatprep.subr.mxu0 0.0
        %273 = vmatpush1.msra.mxu0 0.0
        %274 = vmatprep.subr.mxu0 0.0
        %275 = vmatpush1.msra.mxu0 0.0
        %276 = vmatprep.subr.mxu0 0.0
        %277 = vmatpush1.msra.mxu0 0.0
        %278 = vmatprep.subr.mxu0 0.0
        %279 = vmatpush1.msra.mxu0 0.0
        %280 = vmatprep.subr.mxu0 0.0
        %281 = vmatpush1.msra.mxu0 0.0
        %282 = vmatprep.subr.mxu0 0.0
        %283 = vmatpush1.msra.mxu0 0.0
        %284 = vmatprep.subr.mxu0 0.0
        %285 = vmatpush1.msra.mxu0 0.0
        %286 = vmatprep.subr.mxu0 0.0
        %287 = vmatpush1.msra.mxu0 0.0
        %288 = vmatprep.subr.mxu0 0.0
        %289 = vmatpush1.msra.mxu0 0.0
        %290 = vmatprep.subr.mxu0 0.0
        %291 = vmatpush1.msra.mxu0 0.0
        %292 = vmatprep.subr.mxu0 0.0
        %293 = vmatpush1.msra.mxu0 0.0
        %294 = vmatprep.subr.mxu0 0.0
        %295 = vmatpush1.msra.mxu0 0.0
        %296 = vmatprep.subr.mxu0 0.0
        %297 = vmatpush1.msra.mxu0 0.0
        %298 = vmatprep.subr.mxu0 0.0
        %299 = vmatpush1.msra.mxu0 0.0
        %300 = vmatprep.subr.mxu0 0.0
        %301 = vmatpush1.msra.mxu0 0.0
        %302 = vmatprep.subr.mxu0 0.0
        %303 = vmatpush1.msra.mxu0 0.0
        %304 = vmatprep.subr.mxu0 0.0
        %305 = vmatpush1.msra.mxu0 0.0
        %306 = vmatprep.subr.mxu0 0.0
        %307 = vmatpush1.msra.mxu0 0.0
        %308 = vmatprep.subr.mxu0 0.0
        %309 = vmatpush1.msra.mxu0 0.0
        %310 = vmatprep.subr.mxu0 0.0
        %311 = vmatpush1.msra.mxu0 0.0
        %312 = vmatprep.subr.mxu0 0.0
        %313 = vmatpush1.msra.mxu0 0.0
        %314 = vmatprep.subr.mxu0 0.0
        %315 = vmatpush1.msra.mxu0 0.0
        %316 = vmatprep.subr.mxu0 0.0
        %317 = vmatpush1.msra.mxu0 0.0
        %318 = vmatprep.subr.mxu0 0.0
        %319 = vmatpush1.msra.mxu0 0.0
        %320 = vmatprep.subr.mxu0 0.0
        %321 = vmatpush1.msra.mxu0 0.0
        %322 = vmatprep.subr.mxu0 0.0
        %323 = vmatpush1.msra.mxu0 0.0
        %324 = vmatprep.subr.mxu0 0.0
        %325 = vmatpush1.msra.mxu0 0.0
        %326 = vmatprep.mubr.f32.mxu0 0.0
        %327 = vmatmul.mubr.f32.gmra.mrb[0].mxu0 %v260
        %v328 = vpop.f32.mrb[0].mxu0
        %v329 = vadd.f32 %v256, %v328
        %v330 = vpop.f32.mrb[0].mxu0
        %331 = vdwg.mxu0
        %v332 = vmul.f32 %v329, 0.1
        %v333 = vmax.f32 %v329, %v332
        %335 = vrot.lane.b32.xlu0 %v333, 2
        %v336 = vpop.permute.xlu0 %335
        %vm338 = vcmask 15360
        %v339 = vsel %vm338, 0.0, %v336
        %vm340 = vcmask 146432
        %v341 = vsel %vm340, %v339, 0.0
        %343 = vrot.lane.b32.xlu0 %v341, 127
        %v344 = vpop.permute.xlu0 %343
        %346 = vrot.lane.b32.xlu0 %v341, 126
        %v347 = vpop.permute.xlu0 %346
        %349 = vrot.lane.b32.xlu0 %v341, 125
        %v350 = vpop.permute.xlu0 %349
        %352 = vrot.lane.b32.xlu0 %v341, 124
        %v353 = vpop.permute.xlu0 %352
        %v355 = vld [vmem:[%s4] sm:$0xff]
        %357 = vset.pattern.permute.xlu0 0
        %358 = vperm.xlu0 %357, %v355
        %v359 = vpop.permute.xlu0 %358
        %v361 = vadd.f32 %v329, %v359
        %v362 = vld [vmem:[%s3] sm:$0xff]
        %vm363 = vcmask 326656
        %v365 = vsel %vm363, %v362, 0
        %367 = vmatprep.subr.mxu0 0.0
        %368 = vmatpush1.msra.mxu0 %v341
        %369 = vmatprep.subr.mxu0 0.0
        %370 = vmatpush1.msra.mxu0 %v344
        %371 = vmatprep.subr.mxu0 0.0
        %372 = vmatpush1.msra.mxu0 %v347
        %373 = vmatprep.subr.mxu0 0.0
        %374 = vmatpush1.msra.mxu0 %v350
        %375 = vmatprep.subr.mxu0 0.0
        %376 = vmatpush1.msra.mxu0 %v353
        %377 = vmatprep.subr.mxu0 0.0
        %378 = vmatpush1.msra.mxu0 0.0
        %379 = vmatprep.subr.mxu0 0.0
        %380 = vmatpush1.msra.mxu0 0.0
        %381 = vmatprep.subr.mxu0 0.0
        %382 = vmatpush1.msra.mxu0 0.0
        %383 = vmatprep.subr.mxu0 0.0
        %384 = vmatpush1.msra.mxu0 0.0
        %385 = vmatprep.subr.mxu0 0.0
        %386 = vmatpush1.msra.mxu0 0.0
        %387 = vmatprep.subr.mxu0 0.0
        %388 = vmatpush1.msra.mxu0 0.0
        %389 = vmatprep.subr.mxu0 0.0
        %390 = vmatpush1.msra.mxu0 0.0
        %391 = vmatprep.subr.mxu0 0.0
        %392 = vmatpush1.msra.mxu0 0.0
        %393 = vmatprep.subr.mxu0 0.0
        %394 = vmatpush1.msra.mxu0 0.0
        %395 = vmatprep.subr.mxu0 0.0
        %396 = vmatpush1.msra.mxu0 0.0
        %397 = vmatprep.subr.mxu0 0.0
        %398 = vmatpush1.msra.mxu0 0.0
        %399 = vmatprep.subr.mxu0 0.0
        %400 = vmatpush1.msra.mxu0 0.0
        %401 = vmatprep.subr.mxu0 0.0
        %402 = vmatpush1.msra.mxu0 0.0
        %403 = vmatprep.subr.mxu0 0.0
        %404 = vmatpush1.msra.mxu0 0.0
        %405 = vmatprep.subr.mxu0 0.0
        %406 = vmatpush1.msra.mxu0 0.0
        %407 = vmatprep.subr.mxu0 0.0
        %408 = vmatpush1.msra.mxu0 0.0
        %409 = vmatprep.subr.mxu0 0.0
        %410 = vmatpush1.msra.mxu0 0.0
        %411 = vmatprep.subr.mxu0 0.0
        %412 = vmatpush1.msra.mxu0 0.0
        %413 = vmatprep.subr.mxu0 0.0
        %414 = vmatpush1.msra.mxu0 0.0
        %415 = vmatprep.subr.mxu0 0.0
        %416 = vmatpush1.msra.mxu0 0.0
        %417 = vmatprep.subr.mxu0 0.0
        %418 = vmatpush1.msra.mxu0 0.0
        %419 = vmatprep.subr.mxu0 0.0
        %420 = vmatpush1.msra.mxu0 0.0
        %421 = vmatprep.subr.mxu0 0.0
        %422 = vmatpush1.msra.mxu0 0.0
        %423 = vmatprep.subr.mxu0 0.0
        %424 = vmatpush1.msra.mxu0 0.0
        %425 = vmatprep.subr.mxu0 0.0
        %426 = vmatpush1.msra.mxu0 0.0
        %427 = vmatprep.subr.mxu0 0.0
        %428 = vmatpush1.msra.mxu0 0.0
        %429 = vmatprep.subr.mxu0 0.0
        %430 = vmatpush1.msra.mxu0 0.0
        %431 = vmatprep.mubr.f32.mxu0 0.0
        %432 = vmatmul.mubr.f32.gmra.mrb[0].mxu0 %v365
        %v433 = vpop.f32.mrb[0].mxu0
        %v434 = vadd.f32 0.0, %v433
        %v435 = vpop.f32.mrb[0].mxu0
        %436 = vdwg.mxu0
        %v437 = vadd.f32 %v361, %v434
        %v438 = vmul.f32 %v437, 0.1
        %v439 = vmax.f32 %v437, %v438
        %441 = vrot.lane.b32.xlu0 %v439, 2
        %v442 = vpop.permute.xlu0 %441
        %v444 = vsel %vm338, 0.0, %v442
        %v445 = vsel %vm340, %v444, 0.0
        %447 = vrot.lane.b32.xlu0 %v445, 127
        %v448 = vpop.permute.xlu0 %447
        %450 = vrot.lane.b32.xlu0 %v445, 126
        %v451 = vpop.permute.xlu0 %450
        %453 = vrot.lane.b32.xlu0 %v445, 125
        %v454 = vpop.permute.xlu0 %453
        %456 = vrot.lane.b32.xlu0 %v445, 124
        %v457 = vpop.permute.xlu0 %456
        %s459 = scalar_lea.vmem %s4, 8
        %v460 = vld [vmem:[%s459] sm:$0xff]
        %462 = vset.pattern.permute.xlu0 0
        %463 = vperm.xlu0 %462, %v460
        %v464 = vpop.permute.xlu0 %463
        %v466 = vadd.f32 %v437, %v464
        %s467 = scalar_lea.vmem %s3, 8
        %v468 = vld [vmem:[%s467] sm:$0xff]
        %v470 = vsel %vm363, %v468, 0
        %472 = vmatprep.subr.mxu0 0.0
        %473 = vmatpush1.msra.mxu0 %v445
        %474 = vmatprep.subr.mxu0 0.0
        %475 = vmatpush1.msra.mxu0 %v448
        %476 = vmatprep.subr.mxu0 0.0
        %477 = vmatpush1.msra.mxu0 %v451
        %478 = vmatprep.subr.mxu0 0.0
        %479 = vmatpush1.msra.mxu0 %v454
        %480 = vmatprep.subr.mxu0 0.0
        %481 = vmatpush1.msra.mxu0 %v457
        %482 = vmatprep.subr.mxu0 0.0
        %483 = vmatpush1.msra.mxu0 0.0
        %484 = vmatprep.subr.mxu0 0.0
        %485 = vmatpush1.msra.mxu0 0.0
        %486 = vmatprep.subr.mxu0 0.0
        %487 = vmatpush1.msra.mxu0 0.0
        %488 = vmatprep.subr.mxu0 0.0
        %489 = vmatpush1.msra.mxu0 0.0
        %490 = vmatprep.subr.mxu0 0.0
        %491 = vmatpush1.msra.mxu0 0.0
        %492 = vmatprep.subr.mxu0 0.0
        %493 = vmatpush1.msra.mxu0 0.0
        %494 = vmatprep.subr.mxu0 0.0
        %495 = vmatpush1.msra.mxu0 0.0
        %496 = vmatprep.subr.mxu0 0.0
        %497 = vmatpush1.msra.mxu0 0.0
        %498 = vmatprep.subr.mxu0 0.0
        %499 = vmatpush1.msra.mxu0 0.0
        %500 = vmatprep.subr.mxu0 0.0
        %501 = vmatpush1.msra.mxu0 0.0
        %502 = vmatprep.subr.mxu0 0.0
        %503 = vmatpush1.msra.mxu0 0.0
        %504 = vmatprep.subr.mxu0 0.0
        %505 = vmatpush1.msra.mxu0 0.0
        %506 = vmatprep.subr.mxu0 0.0
        %507 = vmatpush1.msra.mxu0 0.0
        %508 = vmatprep.subr.mxu0 0.0
        %509 = vmatpush1.msra.mxu0 0.0
        %510 = vmatprep.subr.mxu0 0.0
        %511 = vmatpush1.msra.mxu0 0.0
        %512 = vmatprep.subr.mxu0 0.0
        %513 = vmatpush1.msra.mxu0 0.0
        %514 = vmatprep.subr.mxu0 0.0
        %515 = vmatpush1.msra.mxu0 0.0
        %516 = vmatprep.subr.mxu0 0.0
        %517 = vmatpush1.msra.mxu0 0.0
        %518 = vmatprep.subr.mxu0 0.0
        %519 = vmatpush1.msra.mxu0 0.0
        %520 = vmatprep.subr.mxu0 0.0
        %521 = vmatpush1.msra.mxu0 0.0
        %522 = vmatprep.subr.mxu0 0.0
        %523 = vmatpush1.msra.mxu0 0.0
        %524 = vmatprep.subr.mxu0 0.0
        %525 = vmatpush1.msra.mxu0 0.0
        %526 = vmatprep.subr.mxu0 0.0
        %527 = vmatpush1.msra.mxu0 0.0
        %528 = vmatprep.subr.mxu0 0.0
        %529 = vmatpush1.msra.mxu0 0.0
        %530 = vmatprep.subr.mxu0 0.0
        %531 = vmatpush1.msra.mxu0 0.0
        %532 = vmatprep.subr.mxu0 0.0
        %533 = vmatpush1.msra.mxu0 0.0
        %534 = vmatprep.subr.mxu0 0.0
        %535 = vmatpush1.msra.mxu0 0.0
        %536 = vmatprep.mubr.f32.mxu0 0.0
        %537 = vmatmul.mubr.f32.gmra.mrb[0].mxu0 %v470
        %v538 = vpop.f32.mrb[0].mxu0
        %v539 = vadd.f32 0.0, %v538
        %v540 = vpop.f32.mrb[0].mxu0
        %541 = vdwg.mxu0
        %v542 = vadd.f32 %v466, %v539
        %s543 = scalar_lea.vmem %s4, 16
        %v544 = vld [vmem:[%s543] sm:$0xff]
        %546 = vset.pattern.permute.xlu0 0
        %547 = vperm.xlu0 %546, %v544
        %v548 = vpop.permute.xlu0 %547
        %v550 = vadd.f32 %v329, %v548
        %s551 = scalar_lea.vmem %s3, 16
        %v552 = vld [vmem:[%s551] sm:$0xff]
        %v554 = vsel %vm363, %v552, 0
        %556 = vmatprep.subr.mxu0 0.0
        %557 = vmatpush1.msra.mxu0 %v341
        %558 = vmatprep.subr.mxu0 0.0
        %559 = vmatpush1.msra.mxu0 %v344
        %560 = vmatprep.subr.mxu0 0.0
        %561 = vmatpush1.msra.mxu0 %v347
        %562 = vmatprep.subr.mxu0 0.0
        %563 = vmatpush1.msra.mxu0 %v350
        %564 = vmatprep.subr.mxu0 0.0
        %565 = vmatpush1.msra.mxu0 %v353
        %566 = vmatprep.subr.mxu0 0.0
        %567 = vmatpush1.msra.mxu0 0.0
        %568 = vmatprep.subr.mxu0 0.0
        %569 = vmatpush1.msra.mxu0 0.0
        %570 = vmatprep.subr.mxu0 0.0
        %571 = vmatpush1.msra.mxu0 0.0
        %572 = vmatprep.subr.mxu0 0.0
        %573 = vmatpush1.msra.mxu0 0.0
        %574 = vmatprep.subr.mxu0 0.0
        %575 = vmatpush1.msra.mxu0 0.0
        %576 = vmatprep.subr.mxu0 0.0
        %577 = vmatpush1.msra.mxu0 0.0
        %578 = vmatprep.subr.mxu0 0.0
        %579 = vmatpush1.msra.mxu0 0.0
        %580 = vmatprep.subr.mxu0 0.0
        %581 = vmatpush1.msra.mxu0 0.0
        %582 = vmatprep.subr.mxu0 0.0
        %583 = vmatpush1.msra.mxu0 0.0
        %584 = vmatprep.subr.mxu0 0.0
        %585 = vmatpush1.msra.mxu0 0.0
        %586 = vmatprep.subr.mxu0 0.0
        %587 = vmatpush1.msra.mxu0 0.0
        %588 = vmatprep.subr.mxu0 0.0
        %589 = vmatpush1.msra.mxu0 0.0
        %590 = vmatprep.subr.mxu0 0.0
        %591 = vmatpush1.msra.mxu0 0.0
        %592 = vmatprep.subr.mxu0 0.0
        %593 = vmatpush1.msra.mxu0 0.0
        %594 = vmatprep.subr.mxu0 0.0
        %595 = vmatpush1.msra.mxu0 0.0
        %596 = vmatprep.subr.mxu0 0.0
        %597 = vmatpush1.msra.mxu0 0.0
        %598 = vmatprep.subr.mxu0 0.0
        %599 = vmatpush1.msra.mxu0 0.0
        %600 = vmatprep.subr.mxu0 0.0
        %601 = vmatpush1.msra.mxu0 0.0
        %602 = vmatprep.subr.mxu0 0.0
        %603 = vmatpush1.msra.mxu0 0.0
        %604 = vmatprep.subr.mxu0 0.0
        %605 = vmatpush1.msra.mxu0 0.0
        %606 = vmatprep.subr.mxu0 0.0
        %607 = vmatpush1.msra.mxu0 0.0
        %608 = vmatprep.subr.mxu0 0.0
        %609 = vmatpush1.msra.mxu0 0.0
        %610 = vmatprep.subr.mxu0 0.0
        %611 = vmatpush1.msra.mxu0 0.0
        %612 = vmatprep.subr.mxu0 0.0
        %613 = vmatpush1.msra.mxu0 0.0
        %614 = vmatprep.subr.mxu0 0.0
        %615 = vmatpush1.msra.mxu0 0.0
        %616 = vmatprep.subr.mxu0 0.0
        %617 = vmatpush1.msra.mxu0 0.0
        %618 = vmatprep.subr.mxu0 0.0
        %619 = vmatpush1.msra.mxu0 0.0
        %620 = vmatprep.mubr.f32.mxu0 0.0
        %621 = vmatmul.mubr.f32.gmra.mrb[0].mxu0 %v554
        %v622 = vpop.f32.mrb[0].mxu0
        %v623 = vadd.f32 0.0, %v622
        %v624 = vpop.f32.mrb[0].mxu0
        %625 = vdwg.mxu0
        %v626 = vadd.f32 %v550, %v623
        %v627 = vmul.f32 %v626, 0.1
        %v628 = vmax.f32 %v626, %v627
        %630 = vrot.lane.b32.xlu0 %v628, 2
        %v631 = vpop.permute.xlu0 %630
        %v633 = vsel %vm338, 0.0, %v631
        %v634 = vsel %vm340, %v633, 0.0
        %636 = vrot.lane.b32.xlu0 %v634, 127
        %v637 = vpop.permute.xlu0 %636
        %639 = vrot.lane.b32.xlu0 %v634, 126
        %v640 = vpop.permute.xlu0 %639
        %642 = vrot.lane.b32.xlu0 %v634, 125
        %v643 = vpop.permute.xlu0 %642
        %645 = vrot.lane.b32.xlu0 %v634, 124
        %v646 = vpop.permute.xlu0 %645
        %s648 = scalar_lea.vmem %s4, 24
        %v649 = vld [vmem:[%s648] sm:$0xff]
        %651 = vset.pattern.permute.xlu0 0
        %652 = vperm.xlu0 %651, %v649
        %v653 = vpop.permute.xlu0 %652
        %v655 = vadd.f32 %v626, %v653
        %s656 = scalar_lea.vmem %s3, 24
        %v657 = vld [vmem:[%s656] sm:$0xff]
        %v659 = vsel %vm363, %v657, 0
        %661 = vmatprep.subr.mxu0 0.0
        %662 = vmatpush1.msra.mxu0 %v634
        %663 = vmatprep.subr.mxu0 0.0
        %664 = vmatpush1.msra.mxu0 %v637
        %665 = vmatprep.subr.mxu0 0.0
        %666 = vmatpush1.msra.mxu0 %v640
        %667 = vmatprep.subr.mxu0 0.0
        %668 = vmatpush1.msra.mxu0 %v643
        %669 = vmatprep.subr.mxu0 0.0
        %670 = vmatpush1.msra.mxu0 %v646
        %671 = vmatprep.subr.mxu0 0.0
        %672 = vmatpush1.msra.mxu0 0.0
        %673 = vmatprep.subr.mxu0 0.0
        %674 = vmatpush1.msra.mxu0 0.0
        %675 = vmatprep.subr.mxu0 0.0
        %676 = vmatpush1.msra.mxu0 0.0
        %677 = vmatprep.subr.mxu0 0.0
        %678 = vmatpush1.msra.mxu0 0.0
        %679 = vmatprep.subr.mxu0 0.0
        %680 = vmatpush1.msra.mxu0 0.0
        %681 = vmatprep.subr.mxu0 0.0
        %682 = vmatpush1.msra.mxu0 0.0
        %683 = vmatprep.subr.mxu0 0.0
        %684 = vmatpush1.msra.mxu0 0.0
        %685 = vmatprep.subr.mxu0 0.0
        %686 = vmatpush1.msra.mxu0 0.0
        %687 = vmatprep.subr.mxu0 0.0
        %688 = vmatpush1.msra.mxu0 0.0
        %689 = vmatprep.subr.mxu0 0.0
        %690 = vmatpush1.msra.mxu0 0.0
        %691 = vmatprep.subr.mxu0 0.0
        %692 = vmatpush1.msra.mxu0 0.0
        %693 = vmatprep.subr.mxu0 0.0
        %694 = vmatpush1.msra.mxu0 0.0
        %695 = vmatprep.subr.mxu0 0.0
        %696 = vmatpush1.msra.mxu0 0.0
        %697 = vmatprep.subr.mxu0 0.0
        %698 = vmatpush1.msra.mxu0 0.0
        %699 = vmatprep.subr.mxu0 0.0
        %700 = vmatpush1.msra.mxu0 0.0
        %701 = vmatprep.subr.mxu0 0.0
        %702 = vmatpush1.msra.mxu0 0.0
        %703 = vmatprep.subr.mxu0 0.0
        %704 = vmatpush1.msra.mxu0 0.0
        %705 = vmatprep.subr.mxu0 0.0
        %706 = vmatpush1.msra.mxu0 0.0
        %707 = vmatprep.subr.mxu0 0.0
        %708 = vmatpush1.msra.mxu0 0.0
        %709 = vmatprep.subr.mxu0 0.0
        %710 = vmatpush1.msra.mxu0 0.0
        %711 = vmatprep.subr.mxu0 0.0
        %712 = vmatpush1.msra.mxu0 0.0
        %713 = vmatprep.subr.mxu0 0.0
        %714 = vmatpush1.msra.mxu0 0.0
        %715 = vmatprep.subr.mxu0 0.0
        %716 = vmatpush1.msra.mxu0 0.0
        %717 = vmatprep.subr.mxu0 0.0
        %718 = vmatpush1.msra.mxu0 0.0
        %719 = vmatprep.subr.mxu0 0.0
        %720 = vmatpush1.msra.mxu0 0.0
        %721 = vmatprep.subr.mxu0 0.0
        %722 = vmatpush1.msra.mxu0 0.0
        %723 = vmatprep.subr.mxu0 0.0
        %724 = vmatpush1.msra.mxu0 0.0
        %725 = vmatprep.mubr.f32.mxu0 0.0
        %726 = vmatmul.mubr.f32.gmra.mrb[0].mxu0 %v659
        %v727 = vpop.f32.mrb[0].mxu0
        %v728 = vadd.f32 0.0, %v727
        %v729 = vpop.f32.mrb[0].mxu0
        %730 = vdwg.mxu0
        %v731 = vadd.f32 %v655, %v728
        %v732 = vadd.f32 %v542, %v731
        %v733 = vlaneseq
        %v734 = vshrl.u32 %v733, 7
        %v735 = vadd.s32 %v734, 8
        %v736 = vlaneseq
        %v737 = vand.u32 %v736, 127
        %v738 = vmul.u32 %v734, 2
        %v739 = vmul.u32 %v735, 2
        %vm740 = vcmp.eq.s32.totalorder %v737, %v738
        %vm741 = vcmp.eq.s32.totalorder %v737, %v739
        %v742 = vsel %vm740, 0.5, 0.0
        %v743 = vsel %vm741, 0.5, 0.0
        %v744 = vadd.s32 %v738, 1
        %v745 = vadd.s32 %v739, 1
        %vm746 = vcmp.eq.s32.totalorder %v737, %v744
        %vm747 = vcmp.eq.s32.totalorder %v737, %v745
        %v748 = vsel %vm746, 0.5, 0.0
        %v749 = vsel %vm747, 0.5, 0.0
        %v751 = vrot.slane %v732, 4
        %vm752 = vcmask 130048
        %v753 = vsel %vm752, %v751, 0
        %755 = vmatprep.subr.mxu0 0.0
        %756 = vmatpush1.msra.mxu0 %v748
        %757 = vmatprep.subr.mxu0 0.0
        %758 = vmatpush1.msra.mxu0 %v749
        %759 = vmatprep.subr.mxu0 0.0
        %760 = vmatpush1.msra.mxu0 0.0
        %761 = vmatprep.subr.mxu0 0.0
        %762 = vmatpush1.msra.mxu0 0.0
        %763 = vmatprep.subr.mxu0 0.0
        %764 = vmatpush1.msra.mxu0 0.0
        %765 = vmatprep.subr.mxu0 0.0
        %766 = vmatpush1.msra.mxu0 0.0
        %767 = vmatprep.subr.mxu0 0.0
        %768 = vmatpush1.msra.mxu0 0.0
        %769 = vmatprep.subr.mxu0 0.0
        %770 = vmatpush1.msra.mxu0 0.0
        %771 = vmatprep.subr.mxu0 0.0
        %772 = vmatpush1.msra.mxu0 0.0
        %773 = vmatprep.subr.mxu0 0.0
        %774 = vmatpush1.msra.mxu0 0.0
        %775 = vmatprep.subr.mxu0 0.0
        %776 = vmatpush1.msra.mxu0 0.0
        %777 = vmatprep.subr.mxu0 0.0
        %778 = vmatpush1.msra.mxu0 0.0
        %779 = vmatprep.subr.mxu0 0.0
        %780 = vmatpush1.msra.mxu0 0.0
        %781 = vmatprep.subr.mxu0 0.0
        %782 = vmatpush1.msra.mxu0 0.0
        %783 = vmatprep.subr.mxu0 0.0
        %784 = vmatpush1.msra.mxu0 0.0
        %785 = vmatprep.subr.mxu0 0.0
        %786 = vmatpush1.msra.mxu0 0.0
        %787 = vmatprep.subr.mxu0 0.0
        %788 = vmatpush1.msra.mxu0 0.0
        %789 = vmatprep.subr.mxu0 0.0
        %790 = vmatpush1.msra.mxu0 0.0
        %791 = vmatprep.subr.mxu0 0.0
        %792 = vmatpush1.msra.mxu0 0.0
        %793 = vmatprep.subr.mxu0 0.0
        %794 = vmatpush1.msra.mxu0 0.0
        %795 = vmatprep.subr.mxu0 0.0
        %796 = vmatpush1.msra.mxu0 0.0
        %797 = vmatprep.subr.mxu0 0.0
        %798 = vmatpush1.msra.mxu0 0.0
        %799 = vmatprep.subr.mxu0 0.0
        %800 = vmatpush1.msra.mxu0 0.0
        %801 = vmatprep.subr.mxu0 0.0
        %802 = vmatpush1.msra.mxu0 0.0
        %803 = vmatprep.subr.mxu0 0.0
        %804 = vmatpush1.msra.mxu0 0.0
        %805 = vmatprep.subr.mxu0 0.0
        %806 = vmatpush1.msra.mxu0 0.0
        %807 = vmatprep.subr.mxu0 0.0
        %808 = vmatpush1.msra.mxu0 0.0
        %809 = vmatprep.subr.mxu0 0.0
        %810 = vmatpush1.msra.mxu0 0.0
        %811 = vmatprep.subr.mxu0 0.0
        %812 = vmatpush1.msra.mxu0 0.0
        %813 = vmatprep.subr.mxu0 0.0
        %814 = vmatpush1.msra.mxu0 0.0
        %815 = vmatprep.subr.mxu0 0.0
        %816 = vmatpush1.msra.mxu0 0.0
        %817 = vmatprep.subr.mxu0 0.0
        %818 = vmatpush1.msra.mxu0 0.0
        %819 = vmatprep.mubr.f32.mxu0 0.0
        %820 = vmatmul.mubr.f32.gmra.mrb[0].mxu0 %v753
        %v821 = vpop.f32.mrb[0].mxu0
        %v822 = vadd.f32 0.0, %v821
        %v823 = vpop.f32.mrb[0].mxu0
        %824 = vdwg.mxu0
        %v825 = vsel %vm752, %v732, 0
        %827 = vmatprep.subr.mxu0 0.0
        %828 = vmatpush1.msra.mxu0 %v742
        %829 = vmatprep.subr.mxu0 0.0
        %830 = vmatpush1.msra.mxu0 %v743
        %831 = vmatprep.subr.mxu0 0.0
        %832 = vmatpush1.msra.mxu0 0.0
        %833 = vmatprep.subr.mxu0 0.0
        %834 = vmatpush1.msra.mxu0 0.0
        %835 = vmatprep.subr.mxu0 0.0
        %836 = vmatpush1.msra.mxu0 0.0
        %837 = vmatprep.subr.mxu0 0.0
        %838 = vmatpush1.msra.mxu0 0.0
        %839 = vmatprep.subr.mxu0 0.0
        %840 = vmatpush1.msra.mxu0 0.0
        %841 = vmatprep.subr.mxu0 0.0
        %842 = vmatpush1.msra.mxu0 0.0
        %843 = vmatprep.subr.mxu0 0.0
        %844 = vmatpush1.msra.mxu0 0.0
        %845 = vmatprep.subr.mxu0 0.0
        %846 = vmatpush1.msra.mxu0 0.0
        %847 = vmatprep.subr.mxu0 0.0
        %848 = vmatpush1.msra.mxu0 0.0
        %849 = vmatprep.subr.mxu0 0.0
        %850 = vmatpush1.msra.mxu0 0.0
        %851 = vmatprep.subr.mxu0 0.0
        %852 = vmatpush1.msra.mxu0 0.0
        %853 = vmatprep.subr.mxu0 0.0
        %854 = vmatpush1.msra.mxu0 0.0
        %855 = vmatprep.subr.mxu0 0.0
        %856 = vmatpush1.msra.mxu0 0.0
        %857 = vmatprep.subr.mxu0 0.0
        %858 = vmatpush1.msra.mxu0 0.0
        %859 = vmatprep.subr.mxu0 0.0
        %860 = vmatpush1.msra.mxu0 0.0
        %861 = vmatprep.subr.mxu0 0.0
        %862 = vmatpush1.msra.mxu0 0.0
        %863 = vmatprep.subr.mxu0 0.0
        %864 = vmatpush1.msra.mxu0 0.0
        %865 = vmatprep.subr.mxu0 0.0
        %866 = vmatpush1.msra.mxu0 0.0
        %867 = vmatprep.subr.mxu0 0.0
        %868 = vmatpush1.msra.mxu0 0.0
        %869 = vmatprep.subr.mxu0 0.0
        %870 = vmatpush1.msra.mxu0 0.0
        %871 = vmatprep.subr.mxu0 0.0
        %872 = vmatpush1.msra.mxu0 0.0
        %873 = vmatprep.subr.mxu0 0.0
        %874 = vmatpush1.msra.mxu0 0.0
        %875 = vmatprep.subr.mxu0 0.0
        %876 = vmatpush1.msra.mxu0 0.0
        %877 = vmatprep.subr.mxu0 0.0
        %878 = vmatpush1.msra.mxu0 0.0
        %879 = vmatprep.subr.mxu0 0.0
        %880 = vmatpush1.msra.mxu0 0.0
        %881 = vmatprep.subr.mxu0 0.0
        %882 = vmatpush1.msra.mxu0 0.0
        %883 = vmatprep.subr.mxu0 0.0
        %884 = vmatpush1.msra.mxu0 0.0
        %885 = vmatprep.subr.mxu0 0.0
        %886 = vmatpush1.msra.mxu0 0.0
        %887 = vmatprep.subr.mxu0 0.0
        %888 = vmatpush1.msra.mxu0 0.0
        %889 = vmatprep.subr.mxu0 0.0
        %890 = vmatpush1.msra.mxu0 0.0
        %891 = vmatprep.mubr.f32.mxu0 0.0
        %892 = vmatmul.mubr.f32.gmra.mrb[0].mxu0 %v825
        %v893 = vpop.f32.mrb[0].mxu0
        %v894 = vadd.f32 %v822, %v893
        %v895 = vpop.f32.mrb[0].mxu0
        %896 = vdwg.mxu0
        %vm897 = vcmask 257024
        %898 = vst.msk [vmem:[%s228] sm:$0xf] %vm897, %v894
        %s899 = sand.u32 %s138, 1
        %s900 = scalar_lea.sflag [#allocation4], %s899
        %s901 = sand.u32 %s138, 1
        %s902 = smul.addr %s901, 4
        %s903 = scalar_lea.vmem [#allocation5], %s902
        // Predicated region
        $region45: #{us_block_forward.1} parent=39 // pred_check
          %p904 = pneg %p148
        $region46: #{us_block_forward.1} parent=39 // pred_check_branch
          %906 = sbr.rel (%p904) target = $region48
        $region47: #{us_block_forward.1} parent=39 // pred_region
          %s908 = ssub.s32 64, 64
          %909 = vsyncadd %s900, %s908
          %s910 = smul.addr %s20, 64
          %s911 = scalar_lea.hbm %s5, %s910
          %s913 = sshll.u32 %s903, 4
          %s914 = int_to_ptr.vmem [resolvable:$true] %s913
          %916 = dma.vmem_to_hbm [thread:$0]  %s914, 64, %s911, %s900
        $region48: #{us_block_forward.1} parent=39 // pred_fallthru
          _
      $region40: #{us_block_forward.1} parent=5 // pred_fallthru
        _
      %p917 = scmp.le.s32.totalorder 2, %s15
      // Predicated region
      $region49: #{us_block_forward.1} parent=5 // pred_check
        %p918 = pneg %p917
      $region50: #{us_block_forward.1} parent=5 // pred_check_branch
        %920 = sbr.rel (%p918) target = $region52
      $region51: #{us_block_forward.1} parent=5 // pred_region
        %s921 = ssub.s32 %s15, 2
        // Predicated region
        $region53: #{us_block_forward.1} parent=51 // pred_check
          %p922 = pneg %p154
        $region54: #{us_block_forward.1} parent=51 // pred_check_branch
          %924 = sbr.rel (%p922) target = $region56
        $region55: #{us_block_forward.1} parent=51 // pred_region
          %s925 = sand.u32 %s139, 1
          %s926 = scalar_lea.sflag [#allocation4], %s925
          %s927 = sand.u32 %s139, 1
          %s928 = smul.addr %s927, 4
          %s929 = scalar_lea.vmem [#allocation5], %s928
          %930 = dma.done %s926, 64
        $region56: #{us_block_forward.1} parent=51 // pred_fallthru
          _
      $region52: #{us_block_forward.1} parent=5 // pred_fallthru
        _
    $region6: #{us_block_forward.1} parent=1 // loop_footer
      %s19 = sadd.s32 1, %s15
    $region7: #{us_block_forward.1} parent=1 // loop_footer_branch
      %14 = sbr.rel target = $region3
    $region8: #{us_block_forward.1} parent=1 // loop_exit
      _
    %931 = vsyncpa [#allocation3], 1
    %s932 = scalar_lea.sflag [#allocation3], 1
    %933 = vsyncpa %s932, 1
    %934 = vsyncpa [#allocation4], 1
    %s935 = scalar_lea.sflag [#allocation4], 1
    %936 = vsyncpa %s935, 1

</llo_original>
